<compile_context>
chip_gen: v7x
topology: tpu7x:2x2x1
jax: 0.10.0
libtpu: 0.0.40
codegen_flags: <defaults>
</compile_context>

<pallas_src>
import functools

import jax
import jax.numpy as jnp
from jax import lax
from jax.experimental import pallas as pl
from jax.experimental.pallas import tpu as pltpu


# ---------------------------------------------------------------------------
# Pallas kernels: tiled matmul + folded-BN affine (+ residual) (+ ReLU)
# ---------------------------------------------------------------------------
def _mm_bn_kernel(a_ref, w_ref, s_ref, b_ref, o_ref, acc_ref, *, relu):
    k = pl.program_id(2)

    @pl.when(k == 0)
    def _():
        acc_ref[...] = jnp.zeros_like(acc_ref)

    acc_ref[...] += jnp.dot(a_ref[...], w_ref[...],
                            preferred_element_type=jnp.float32)

    @pl.when(k == pl.num_programs(2) - 1)
    def _():
        y = acc_ref[...] * s_ref[...] + b_ref[...]
        if relu:
            y = jnp.maximum(y, 0.0)
        o_ref[...] = y.astype(o_ref.dtype)


def _mm_bn_add_relu_kernel(a_ref, w_ref, s_ref, b_ref, r_ref, o_ref, acc_ref):
    """Identity-shortcut variant: residual tile added in the epilogue."""
    k = pl.program_id(2)

    @pl.when(k == 0)
    def _():
        acc_ref[...] = jnp.zeros_like(acc_ref)

    acc_ref[...] += jnp.dot(a_ref[...], w_ref[...],
                            preferred_element_type=jnp.float32)

    @pl.when(k == pl.num_programs(2) - 1)
    def _():
        y = (acc_ref[...] * s_ref[...] + b_ref[...]
             + r_ref[...].astype(jnp.float32))
        o_ref[...] = jnp.maximum(y, 0.0).astype(o_ref.dtype)


def _mm_bn_proj_relu_kernel(a_ref, w_ref, s_ref, b_ref,
                            xs_ref, wsc_ref, ssc_ref, bsc_ref,
                            o_ref, acc_ref):
    """Projection-shortcut variant: 1x1-conv shortcut fused into the epilogue."""
    k = pl.program_id(2)

    @pl.when(k == 0)
    def _():
        acc_ref[...] = jnp.zeros_like(acc_ref)

    acc_ref[...] += jnp.dot(a_ref[...], w_ref[...],
                            preferred_element_type=jnp.float32)

    @pl.when(k == pl.num_programs(2) - 1)
    def _():
        res = jnp.dot(xs_ref[...], wsc_ref[...],
                      preferred_element_type=jnp.float32)
        res = res * ssc_ref[...] + bsc_ref[...]
        y = acc_ref[...] * s_ref[...] + b_ref[...] + res
        o_ref[...] = jnp.maximum(y, 0.0).astype(o_ref.dtype)


# ---------------------------------------------------------------------------
# Tiled fused matmul wrapper
# ---------------------------------------------------------------------------
def _round_up(x, m):
    return (x + m - 1) // m * m


def _pick_tile(dim, candidates):
    for c in candidates:
        if dim % c == 0:
            return c
    return 128  # dim is always a multiple of 128 after padding


def _pad2(x, rows, cols):
    r, c = x.shape
    if r == rows and c == cols:
        return x
    return jnp.pad(x, ((0, rows - r), (0, cols - c)))


def fused_conv_matmul(a, w, scale, bias, *, relu,
                      residual=None, shortcut=None, out_dtype=jnp.float32):
    """out = act((a @ w) * scale + bias [+ residual | + (xs@wsc)*ssc+bsc])."""
    M, K = a.shape
    Kw, C = w.shape
    assert K == Kw

    Mp = _round_up(M, 128)
    Kp = _round_up(K, 128)
    Cp = _round_up(C, 128)
    tm = _pick_tile(Mp, (512, 256, 128))     # sublane / MXU rows
    tk = _pick_tile(Kp, (512, 256, 128))     # reduction chunk
    tn = _pick_tile(Cp, (256, 128))          # lane-dense output width

    a_p = _pad2(a, Mp, Kp)
    w_p = _pad2(w, Kp, Cp)
    s_p = _pad2(scale.astype(jnp.float32).reshape(1, C), 1, Cp)
    b_p = _pad2(bias.astype(jnp.float32).reshape(1, C), 1, Cp)

    grid = (Mp // tm, Cp // tn, Kp // tk)

    a_spec = pl.BlockSpec((tm, tk), lambda i, j, k: (i, k))
    w_spec = pl.BlockSpec((tk, tn), lambda i, j, k: (k, j))
    v_spec = pl.BlockSpec((1, tn), lambda i, j, k: (0, j))   # per-Cout vectors
    o_spec = pl.BlockSpec((tm, tn), lambda i, j, k: (i, j))

    if shortcut is not None:
        xs, wsc, ssc, bsc = shortcut
        Cin = xs.shape[1]
        Cin_p = _round_up(Cin, 128)
        xs_p = _pad2(xs, Mp, Cin_p)
        wsc_p = _pad2(wsc, Cin_p, Cp)
        ssc_p = _pad2(ssc.astype(jnp.float32).reshape(1, C), 1, Cp)
        bsc_p = _pad2(bsc.astype(jnp.float32).reshape(1, C), 1, Cp)

        kernel = _mm_bn_proj_relu_kernel
        in_specs = [a_spec, w_spec, v_spec, v_spec,
                    pl.BlockSpec((tm, Cin_p), lambda i, j, k: (i, 0)),
                    pl.BlockSpec((Cin_p, tn), lambda i, j, k: (0, j)),
                    v_spec, v_spec]
        args = (a_p, w_p, s_p, b_p, xs_p, wsc_p, ssc_p, bsc_p)
    elif residual is not None:
        r_p = _pad2(residual, Mp, Cp)
        kernel = _mm_bn_add_relu_kernel
        in_specs = [a_spec, w_spec, v_spec, v_spec,
                    pl.BlockSpec((tm, tn), lambda i, j, k: (i, j))]
        args = (a_p, w_p, s_p, b_p, r_p)
    else:
        kernel = functools.partial(_mm_bn_kernel, relu=relu)
        in_specs = [a_spec, w_spec, v_spec, v_spec]
        args = (a_p, w_p, s_p, b_p)

    out = pl.pallas_call(
        kernel,
        grid=grid,
        in_specs=in_specs,
        out_specs=o_spec,
        out_shape=jax.ShapeDtypeStruct((Mp, Cp), out_dtype),
        scratch_shapes=[pltpu.VMEM((tm, tn), jnp.float32)],
        compiler_params=pltpu.CompilerParams(
            dimension_semantics=("parallel", "parallel", "arbitrary"),
            vmem_limit_bytes=32 * 1024 * 1024),
    )(*args)
    return out[:M, :C]


# ---------------------------------------------------------------------------
# Glue (plain JAX): im2col, BN folding, weight reshapes
# ---------------------------------------------------------------------------
def _im2col_3x3(x_nhwc, stride):
    N, H, W, C = x_nhwc.shape
    xp = jnp.pad(x_nhwc, ((0, 0), (1, 1), (1, 1), (0, 0)))
    Ho = (H + 2 - 3) // stride + 1
    Wo = (W + 2 - 3) // stride + 1
    cols = []
    for kh in range(3):
        for kw in range(3):
            cols.append(xp[:, kh:kh + stride * (Ho - 1) + 1:stride,
                           kw:kw + stride * (Wo - 1) + 1:stride, :])
    patches = jnp.concatenate(cols, axis=-1)          # [N, Ho, Wo, 9*C]
    return patches.reshape(N * Ho * Wo, 9 * C), (N, Ho, Wo)


def _fold_bn(gamma, beta, mean, var, eps=1e-5):
    scale = gamma / jnp.sqrt(var + eps)
    bias = beta - mean * scale
    return scale, bias


def _w3x3_to_mat(w):
    # (Cout, Cin, 3, 3) -> (9*Cin, Cout), matching im2col ordering (kh, kw, cin)
    return jnp.transpose(w, (2, 3, 1, 0)).reshape(-1, w.shape[0])


@functools.partial(jax.jit, static_argnames=("stride", "compute_dtype"))
def basic_block_forward(x_nchw, p, stride, compute_dtype=jnp.bfloat16):
    x = jnp.transpose(x_nchw, (0, 2, 3, 1)).astype(compute_dtype)  # NHWC bf16
    N, H, W, Cin = x.shape
    mid_planes = p["w1"].shape[0]
    out_planes = p["w2"].shape[0]

    s1, b1 = _fold_bn(*p["bn1"])
    s2, b2 = _fold_bn(*p["bn2"])

    # conv1 (3x3, stride) + bn1 + relu -> one tiled Pallas call, bf16 output
    a1, (n, ho, wo) = _im2col_3x3(x, stride)
    y1 = fused_conv_matmul(a1, _w3x3_to_mat(p["w1"]).astype(compute_dtype),
                           s1, b1, relu=True, out_dtype=compute_dtype)
    y1 = y1.reshape(n, ho, wo, mid_planes)

    # conv2 (3x3, stride 1) + bn2 + residual + relu -> one tiled Pallas call
    a2, _ = _im2col_3x3(y1, 1)
    w2m = _w3x3_to_mat(p["w2"]).astype(compute_dtype)

    if p.get("w_sc") is not None:
        # projection shortcut (1x1 conv + bn) fused into conv2's epilogue
        xs = x[:, ::stride, ::stride, :].reshape(n * ho * wo, Cin)
        ssc, bsc = _fold_bn(*p["bn_sc"])
        wsc = jnp.transpose(p["w_sc"].reshape(out_planes, Cin),
                            (1, 0)).astype(compute_dtype)
        y2 = fused_conv_matmul(a2, w2m, s2, b2, relu=True,
                               shortcut=(xs, wsc, ssc, bsc))
    else:
        # identity shortcut (stride==1, Cin==Cout)
        res = x.reshape(n * ho * wo, Cin)
        y2 = fused_conv_matmul(a2, w2m, s2, b2, relu=True, residual=res)

    y2 = y2.reshape(n, ho, wo, out_planes).astype(jnp.float32)
    return jnp.transpose(y2, (0, 3, 1, 2))  # back to NCHW


# ---------------------------------------------------------------------------
# Pure-JAX reference (lax.conv, f32) for correctness checking
# ---------------------------------------------------------------------------
def reference_forward(x, p, stride, eps=1e-5):
    def conv(xx, w, s, pad):
        return lax.conv_general_dilated(
            xx, w, (s, s), ((pad, pad), (pad, pad)),
            dimension_numbers=("NCHW", "OIHW", "NCHW"))

    def bn(xx, params):
        g, b, m, v = params
        return ((xx - m[None, :, None, None])
                / jnp.sqrt(v[None, :, None, None] + eps)
                * g[None, :, None, None] + b[None, :, None, None])

    out = jax.nn.relu(bn(conv(x, p["w1"], stride, 1), p["bn1"]))
    out = bn(conv(out, p["w2"], 1, 1), p["bn2"])
    sc = (bn(conv(x, p["w_sc"], stride, 0), p["bn_sc"])
          if p.get("w_sc") is not None else x)
    return jax.nn.relu(out + sc)


# ---------------------------------------------------------------------------
# Deterministic parameter construction + run
# ---------------------------------------------------------------------------
def _make_bn_params(key, c):
    k1, k2, k3, k4 = jax.random.split(key, 4)
    gamma = jax.random.uniform(k1, (c,), jnp.float32, 0.5, 1.5)
    beta = 0.1 * jax.random.normal(k2, (c,), jnp.float32)
    mean = 0.1 * jax.random.normal(k3, (c,), jnp.float32)
    var = jax.random.uniform(k4, (c,), jnp.float32, 0.5, 1.5)
    return (gamma, beta, mean, var)


if __name__ == "__main__":
    in_planes, mid_planes, out_planes, stride = 4, 8, 8, 2
    N, H, W = 2, 16, 16

    key = jax.random.PRNGKey(0)
    kx, kw1, kw2, kws, kb1, kb2, kbs = jax.random.split(key, 7)

    x = jax.random.normal(kx, (N, in_planes, H, W), jnp.float32)

    params = {
        "w1": 0.1 * jax.random.normal(kw1, (mid_planes, in_planes, 3, 3), jnp.float32),
        "bn1": _make_bn_params(kb1, mid_planes),
        "w2": 0.1 * jax.random.normal(kw2, (out_planes, mid_planes, 3, 3), jnp.float32),
        "bn2": _make_bn_params(kb2, out_planes),
    }
    if stride != 1 or in_planes != out_planes:
        params["w_sc"] = 0.1 * jax.random.normal(
            kws, (out_planes, in_planes, 1, 1), jnp.float32)
        params["bn_sc"] = _make_bn_params(kbs, out_planes)

    out = jax.block_until_ready(basic_block_forward(x, params, stride))
    ref = jax.block_until_ready(reference_forward(x, params, stride))

    assert out.shape == (N, out_planes, H // stride, W // stride), out.shape
    # bf16 datapath with f32 accumulation -> bf16-level tolerance vs f32 reference
    assert jnp.allclose(out, ref, atol=5e-2, rtol=5e-2), (
        float(jnp.max(jnp.abs(out - ref))))
    print("KERNEL_OK")
</pallas_src>

<mosaic_0001>
module attributes {stable_mosaic.version = 11 : i64} {
  func.func @_mm_bn_kernel(%arg0: i32, %arg1: i32, %arg2: i32, %arg3: memref<128x128xbf16, #tpu.memory_space<vmem>>, %arg4: memref<128x128xbf16, #tpu.memory_space<vmem>>, %arg5: memref<1x128xf32, #tpu.memory_space<vmem>>, %arg6: memref<1x128xf32, #tpu.memory_space<vmem>>, %arg7: memref<128x128xbf16, #tpu.memory_space<vmem>>, %arg8: memref<128x128xf32, #tpu.memory_space<vmem>>) attributes {dimension_semantics = [#tpu.dimension_semantics<parallel>, #tpu.dimension_semantics<parallel>, #tpu.dimension_semantics<arbitrary>], iteration_bounds = array<i64: 1, 1, 1>, scalar_prefetch = 0 : i64, scratch_operands = 1 : i64, tpu.core_type = #tpu.core_type<tc>, window_params = [{transform_indices = @transform_0, window_bounds = array<i64: 128, 128>}, {transform_indices = @transform_1, window_bounds = array<i64: 128, 128>}, {transform_indices = @transform_2, window_bounds = array<i64: 1, 128>}, {transform_indices = @transform_3, window_bounds = array<i64: 1, 128>}, {transform_indices = @transform_4, window_bounds = array<i64: 128, 128>}]} {
    %c0_i32 = arith.constant 0 : i32
    %0 = arith.cmpi eq, %arg2, %c0_i32 : i32
    %1 = arith.extui %0 : i1 to i32
    %c0_i32_0 = arith.constant 0 : i32
    %2 = arith.cmpi ne, %1, %c0_i32_0 : i32
    scf.if %2 {
      %cst_10 = arith.constant 0.000000e+00 : f32
      %12 = vector.broadcast %cst_10 : f32 to vector<128x128xf32>
      %c0_11 = arith.constant 0 : index
      %c0_12 = arith.constant 0 : index
      %13 = vector.load %arg8[%c0_11, %c0_12] : memref<128x128xf32, #tpu.memory_space<vmem>>, vector<128x128xf32>
      tpu.vector_store %arg8[%c0_11, %c0_12], %12 {strides = array<i32>} : memref<128x128xf32, #tpu.memory_space<vmem>>, vector<128x128xf32>,
    } else {
    }
    %c0 = arith.constant 0 : index
    %c0_1 = arith.constant 0 : index
    %3 = vector.load %arg8[%c0, %c0_1] : memref<128x128xf32, #tpu.memory_space<vmem>>, vector<128x128xf32>
    %c0_2 = arith.constant 0 : index
    %c0_3 = arith.constant 0 : index
    %4 = vector.load %arg3[%c0_2, %c0_3] : memref<128x128xbf16, #tpu.memory_space<vmem>>, vector<128x128xbf16>
    %c0_4 = arith.constant 0 : index
    %c0_5 = arith.constant 0 : index
    %5 = vector.load %arg4[%c0_4, %c0_5] : memref<128x128xbf16, #tpu.memory_space<vmem>>, vector<128x128xbf16>
    %cst = arith.constant dense<0.000000e+00> : vector<128x128xf32>
    %6 = tpu.matmul %4, %5, %cst {dimension_numbers = #tpu.dot_dimension_numbers<[1], [0], [0], [1], [0, 0, 1, 1], [], []>} : vector<128x128xbf16>, vector<128x128xbf16>, vector<128x128xf32> -> vector<128x128xf32>
    %7 = arith.addf %3, %6 : vector<128x128xf32>
    %c0_6 = arith.constant 0 : index
    %c0_7 = arith.constant 0 : index
    %8 = vector.load %arg8[%c0_6, %c0_7] : memref<128x128xf32, #tpu.memory_space<vmem>>, vector<128x128xf32>
    tpu.vector_store %arg8[%c0_6, %c0_7], %7 {strides = array<i32>} : memref<128x128xf32, #tpu.memory_space<vmem>>, vector<128x128xf32>,
    %c0_i32_8 = arith.constant 0 : i32
    %9 = arith.cmpi eq, %arg2, %c0_i32_8 : i32
    %10 = arith.extui %9 : i1 to i32
    %c0_i32_9 = arith.constant 0 : i32
    %11 = arith.cmpi ne, %10, %c0_i32_9 : i32
    scf.if %11 {
      %c0_10 = arith.constant 0 : index
      %c0_11 = arith.constant 0 : index
      %12 = vector.load %arg8[%c0_10, %c0_11] : memref<128x128xf32, #tpu.memory_space<vmem>>, vector<128x128xf32>
      %c0_12 = arith.constant 0 : index
      %c0_13 = arith.constant 0 : index
      %13 = vector.load %arg5[%c0_12, %c0_13] : memref<1x128xf32, #tpu.memory_space<vmem>>, vector<1x128xf32>
      %14 = vector.broadcast %13 : vector<1x128xf32> to vector<128x128xf32>
      %15 = arith.mulf %12, %14 : vector<128x128xf32>
      %c0_14 = arith.constant 0 : index
      %c0_15 = arith.constant 0 : index
      %16 = vector.load %arg6[%c0_14, %c0_15] : memref<1x128xf32, #tpu.memory_space<vmem>>, vector<1x128xf32>
      %17 = vector.broadcast %16 : vector<1x128xf32> to vector<128x128xf32>
      %18 = arith.addf %15, %17 : vector<128x128xf32>
      %cst_16 = arith.constant 0.000000e+00 : f32
      %19 = vector.broadcast %cst_16 : f32 to vector<128x128xf32>
      %20 = arith.maximumf %18, %19 : vector<128x128xf32>
      %21 = arith.truncf %20 : vector<128x128xf32> to vector<128x128xbf16>
      %c0_17 = arith.constant 0 : index
      %c0_18 = arith.constant 0 : index
      %22 = vector.load %arg7[%c0_17, %c0_18] : memref<128x128xbf16, #tpu.memory_space<vmem>>, vector<128x128xbf16>
      tpu.vector_store %arg7[%c0_17, %c0_18], %21 {strides = array<i32>} : memref<128x128xbf16, #tpu.memory_space<vmem>>, vector<128x128xbf16>,
    } else {
    }
    return
  }
  func.func @transform_0(%arg0: i32, %arg1: i32, %arg2: i32) -> (i32, i32) {
    %c0_i32 = arith.constant 0 : i32
    return %arg0, %arg2 : i32, i32
  }
  func.func @transform_1(%arg0: i32, %arg1: i32, %arg2: i32) -> (i32, i32) {
    %c0_i32 = arith.constant 0 : i32
    return %arg2, %arg1 : i32, i32
  }
  func.func @transform_2(%arg0: i32, %arg1: i32, %arg2: i32) -> (i32, i32) {
    %c0_i32 = arith.constant 0 : i32
    %c0_i32_0 = arith.constant 0 : i32
    return %c0_i32, %arg1 : i32, i32
  }
  func.func @transform_3(%arg0: i32, %arg1: i32, %arg2: i32) -> (i32, i32) {
    %c0_i32 = arith.constant 0 : i32
    %c0_i32_0 = arith.constant 0 : i32
    return %c0_i32, %arg1 : i32, i32
  }
  func.func @transform_4(%arg0: i32, %arg1: i32, %arg2: i32) -> (i32, i32) {
    %c0_i32 = arith.constant 0 : i32
    return %arg0, %arg1 : i32, i32
  }
}

module attributes {stable_mosaic.version = 11 : i64} {
  func.func @_mm_bn_proj_relu_kernel(%arg0: i32, %arg1: i32, %arg2: i32, %arg3: memref<128x128xbf16, #tpu.memory_space<vmem>>, %arg4: memref<128x128xbf16, #tpu.memory_space<vmem>>, %arg5: memref<1x128xf32, #tpu.memory_space<vmem>>, %arg6: memref<1x128xf32, #tpu.memory_space<vmem>>, %arg7: memref<128x128xbf16, #tpu.memory_space<vmem>>, %arg8: memref<128x128xbf16, #tpu.memory_space<vmem>>, %arg9: memref<1x128xf32, #tpu.memory_space<vmem>>, %arg10: memref<1x128xf32, #tpu.memory_space<vmem>>, %arg11: memref<128x128xf32, #tpu.memory_space<vmem>>, %arg12: memref<128x128xf32, #tpu.memory_space<vmem>>) attributes {dimension_semantics = [#tpu.dimension_semantics<parallel>, #tpu.dimension_semantics<parallel>, #tpu.dimension_semantics<arbitrary>], iteration_bounds = array<i64: 1, 1, 1>, scalar_prefetch = 0 : i64, scratch_operands = 1 : i64, tpu.core_type = #tpu.core_type<tc>, window_params = [{transform_indices = @transform_0, window_bounds = array<i64: 128, 128>}, {transform_indices = @transform_1, window_bounds = array<i64: 128, 128>}, {transform_indices = @transform_2, window_bounds = array<i64: 1, 128>}, {transform_indices = @transform_3, window_bounds = array<i64: 1, 128>}, {transform_indices = @transform_4, window_bounds = array<i64: 128, 128>}, {transform_indices = @transform_5, window_bounds = array<i64: 128, 128>}, {transform_indices = @transform_6, window_bounds = array<i64: 1, 128>}, {transform_indices = @transform_7, window_bounds = array<i64: 1, 128>}, {transform_indices = @transform_8, window_bounds = array<i64: 128, 128>}]} {
    %c0_i32 = arith.constant 0 : i32
    %0 = arith.cmpi eq, %arg2, %c0_i32 : i32
    %1 = arith.extui %0 : i1 to i32
    %c0_i32_0 = arith.constant 0 : i32
    %2 = arith.cmpi ne, %1, %c0_i32_0 : i32
    scf.if %2 {
      %cst_10 = arith.constant 0.000000e+00 : f32
      %12 = vector.broadcast %cst_10 : f32 to vector<128x128xf32>
      %c0_11 = arith.constant 0 : index
      %c0_12 = arith.constant 0 : index
      %13 = vector.load %arg12[%c0_11, %c0_12] : memref<128x128xf32, #tpu.memory_space<vmem>>, vector<128x128xf32>
      tpu.vector_store %arg12[%c0_11, %c0_12], %12 {strides = array<i32>} : memref<128x128xf32, #tpu.memory_space<vmem>>, vector<128x128xf32>,
    } else {
    }
    %c0 = arith.constant 0 : index
    %c0_1 = arith.constant 0 : index
    %3 = vector.load %arg12[%c0, %c0_1] : memref<128x128xf32, #tpu.memory_space<vmem>>, vector<128x128xf32>
    %c0_2 = arith.constant 0 : index
    %c0_3 = arith.constant 0 : index
    %4 = vector.load %arg3[%c0_2, %c0_3] : memref<128x128xbf16, #tpu.memory_space<vmem>>, vector<128x128xbf16>
    %c0_4 = arith.constant 0 : index
    %c0_5 = arith.constant 0 : index
    %5 = vector.load %arg4[%c0_4, %c0_5] : memref<128x128xbf16, #tpu.memory_space<vmem>>, vector<128x128xbf16>
    %cst = arith.constant dense<0.000000e+00> : vector<128x128xf32>
    %6 = tpu.matmul %4, %5, %cst {dimension_numbers = #tpu.dot_dimension_numbers<[1], [0], [0], [1], [0, 0, 1, 1], [], []>} : vector<128x128xbf16>, vector<128x128xbf16>, vector<128x128xf32> -> vector<128x128xf32>
    %7 = arith.addf %3, %6 : vector<128x128xf32>
    %c0_6 = arith.constant 0 : index
    %c0_7 = arith.constant 0 : index
    %8 = vector.load %arg12[%c0_6, %c0_7] : memref<128x128xf32, #tpu.memory_space<vmem>>, vector<128x128xf32>
    tpu.vector_store %arg12[%c0_6, %c0_7], %7 {strides = array<i32>} : memref<128x128xf32, #tpu.memory_space<vmem>>, vector<128x128xf32>,
    %c0_i32_8 = arith.constant 0 : i32
    %9 = arith.cmpi eq, %arg2, %c0_i32_8 : i32
    %10 = arith.extui %9 : i1 to i32
    %c0_i32_9 = arith.constant 0 : i32
    %11 = arith.cmpi ne, %10, %c0_i32_9 : i32
    scf.if %11 {
      %c0_10 = arith.constant 0 : index
      %c0_11 = arith.constant 0 : index
      %12 = vector.load %arg7[%c0_10, %c0_11] : memref<128x128xbf16, #tpu.memory_space<vmem>>, vector<128x128xbf16>
      %c0_12 = arith.constant 0 : index
      %c0_13 = arith.constant 0 : index
      %13 = vector.load %arg8[%c0_12, %c0_13] : memref<128x128xbf16, #tpu.memory_space<vmem>>, vector<128x128xbf16>
      %cst_14 = arith.constant dense<0.000000e+00> : vector<128x128xf32>
      %14 = tpu.matmul %12, %13, %cst_14 {dimension_numbers = #tpu.dot_dimension_numbers<[1], [0], [0], [1], [0, 0, 1, 1], [], []>} : vector<128x128xbf16>, vector<128x128xbf16>, vector<128x128xf32> -> vector<128x128xf32>
      %c0_15 = arith.constant 0 : index
      %c0_16 = arith.constant 0 : index
      %15 = vector.load %arg9[%c0_15, %c0_16] : memref<1x128xf32, #tpu.memory_space<vmem>>, vector<1x128xf32>
      %16 = vector.broadcast %15 : vector<1x128xf32> to vector<128x128xf32>
      %17 = arith.mulf %14, %16 : vector<128x128xf32>
      %c0_17 = arith.constant 0 : index
      %c0_18 = arith.constant 0 : index
      %18 = vector.load %arg10[%c0_17, %c0_18] : memref<1x128xf32, #tpu.memory_space<vmem>>, vector<1x128xf32>
      %19 = vector.broadcast %18 : vector<1x128xf32> to vector<128x128xf32>
      %20 = arith.addf %17, %19 : vector<128x128xf32>
      %c0_19 = arith.constant 0 : index
      %c0_20 = arith.constant 0 : index
      %21 = vector.load %arg12[%c0_19, %c0_20] : memref<128x128xf32, #tpu.memory_space<vmem>>, vector<128x128xf32>
      %c0_21 = arith.constant 0 : index
      %c0_22 = arith.constant 0 : index
      %22 = vector.load %arg5[%c0_21, %c0_22] : memref<1x128xf32, #tpu.memory_space<vmem>>, vector<1x128xf32>
      %23 = vector.broadcast %22 : vector<1x128xf32> to vector<128x128xf32>
      %24 = arith.mulf %21, %23 : vector<128x128xf32>
      %c0_23 = arith.constant 0 : index
      %c0_24 = arith.constant 0 : index
      %25 = vector.load %arg6[%c0_23, %c0_24] : memref<1x128xf32, #tpu.memory_space<vmem>>, vector<1x128xf32>
      %26 = vector.broadcast %25 : vector<1x128xf32> to vector<128x128xf32>
      %27 = arith.addf %24, %26 : vector<128x128xf32>
      %28 = arith.addf %27, %20 : vector<128x128xf32>
      %cst_25 = arith.constant 0.000000e+00 : f32
      %29 = vector.broadcast %cst_25 : f32 to vector<128x128xf32>
      %30 = arith.maximumf %28, %29 : vector<128x128xf32>
      %c0_26 = arith.constant 0 : index
      %c0_27 = arith.constant 0 : index
      %31 = vector.load %arg11[%c0_26, %c0_27] : memref<128x128xf32, #tpu.memory_space<vmem>>, vector<128x128xf32>
      tpu.vector_store %arg11[%c0_26, %c0_27], %30 {strides = array<i32>} : memref<128x128xf32, #tpu.memory_space<vmem>>, vector<128x128xf32>,
    } else {
    }
    return
  }
  func.func @transform_0(%arg0: i32, %arg1: i32, %arg2: i32) -> (i32, i32) {
    %c0_i32 = arith.constant 0 : i32
    return %arg0, %arg2 : i32, i32
  }
  func.func @transform_1(%arg0: i32, %arg1: i32, %arg2: i32) -> (i32, i32) {
    %c0_i32 = arith.constant 0 : i32
    return %arg2, %arg1 : i32, i32
  }
  func.func @transform_2(%arg0: i32, %arg1: i32, %arg2: i32) -> (i32, i32) {
    %c0_i32 = arith.constant 0 : i32
    %c0_i32_0 = arith.constant 0 : i32
    return %c0_i32, %arg1 : i32, i32
  }
  func.func @transform_3(%arg0: i32, %arg1: i32, %arg2: i32) -> (i32, i32) {
    %c0_i32 = arith.constant 0 : i32
    %c0_i32_0 = arith.constant 0 : i32
    return %c0_i32, %arg1 : i32, i32
  }
  func.func @transform_4(%arg0: i32, %arg1: i32, %arg2: i32) -> (i32, i32) {
    %c0_i32 = arith.constant 0 : i32
    %c0_i32_0 = arith.constant 0 : i32
    return %arg0, %c0_i32 : i32, i32
  }
  func.func @transform_5(%arg0: i32, %arg1: i32, %arg2: i32) -> (i32, i32) {
    %c0_i32 = arith.constant 0 : i32
    %c0_i32_0 = arith.constant 0 : i32
    return %c0_i32, %arg1 : i32, i32
  }
  func.func @transform_6(%arg0: i32, %arg1: i32, %arg2: i32) -> (i32, i32) {
    %c0_i32 = arith.constant 0 : i32
    %c0_i32_0 = arith.constant 0 : i32
    return %c0_i32, %arg1 : i32, i32
  }
  func.func @transform_7(%arg0: i32, %arg1: i32, %arg2: i32) -> (i32, i32) {
    %c0_i32 = arith.constant 0 : i32
    %c0_i32_0 = arith.constant 0 : i32
    return %c0_i32, %arg1 : i32, i32
  }
  func.func @transform_8(%arg0: i32, %arg1: i32, %arg2: i32) -> (i32, i32) {
    %c0_i32 = arith.constant 0 : i32
    return %arg0, %arg1 : i32, i32
  }
}

</mosaic_0001>

<llo_original>
// kernel: basic_block_forward.2
$region0: #{basic_block_forward.2}
  #allocation0 [shape = 'u32[]', space=smem, size = 0x4, offset = 0x4, fixed_abs, tag = 'smem constant byte address 0x4 - core index']
  #allocation1 [shape = 'u32[144,128]{1,0:T(1,128)}', space=vmem, size = 0x12000, scoped, tag = 'internal scratch']
  #allocation2 [shape = 'f32[128,128]{1,0:T(8,128)}', space=vmem, size = 0x10000, scoped, tag = 'scratch operand']
  %s0 = inlined_call_operand.vmem [shape: bf16[128,128], index: 0, kind: input, shape index: {}]
  %s1 = inlined_call_operand.vmem [shape: bf16[128,128], index: 1, kind: input, shape index: {}]
  %s2 = inlined_call_operand.vmem [shape: f32[1,128], index: 2, kind: input, shape index: {}]
  %s3 = inlined_call_operand.vmem [shape: f32[1,128], index: 3, kind: input, shape index: {}]
  %s4 = inlined_call_operand.vmem [shape: bf16[128,128], index: 4, kind: output, shape index: {}]
  %s5 = sld [smem:[#allocation0]]
  $region34: #{basic_block_forward.2} parent=0
    _
  %s7 = ssub.s32 1, %s5
  %s8 = scalar_select 0, %s7, %s5
  // Predicated region
  $region2: #{basic_block_forward.2} parent=0 // pred_check
    _
  $region3: #{basic_block_forward.2} parent=0 // pred_check_branch
    %10 = sbr.rel (0) target = $region5
  $region4: #{basic_block_forward.2} parent=0 // pred_region
    _
  $region5: #{basic_block_forward.2} parent=0 // pred_fallthru
    _
  // Predicated region
  $region6: #{basic_block_forward.2} parent=0 // pred_check
    _
  $region7: #{basic_block_forward.2} parent=0 // pred_check_branch
    %12 = sbr.rel (0) target = $region9
  $region8: #{basic_block_forward.2} parent=0 // pred_region
    _
  $region9: #{basic_block_forward.2} parent=0 // pred_fallthru
    _
  // Predicated region
  $region10: #{basic_block_forward.2} parent=0 // pred_check
    _
  $region11: #{basic_block_forward.2} parent=0 // pred_check_branch
    %14 = sbr.rel (0) target = $region13
  $region12: #{basic_block_forward.2} parent=0 // pred_region
    _
  $region13: #{basic_block_forward.2} parent=0 // pred_fallthru
    _
  // Predicated region
  $region14: #{basic_block_forward.2} parent=0 // pred_check
    _
  $region15: #{basic_block_forward.2} parent=0 // pred_check_branch
    %16 = sbr.rel (0) target = $region17
  $region16: #{basic_block_forward.2} parent=0 // pred_region
    _
  $region17: #{basic_block_forward.2} parent=0 // pred_fallthru
    _
  %p18 = scmp.eq.s32.totalorder 0, 0
  // Predicated region
  $region18: #{basic_block_forward.2} parent=0 // pred_check
    %p19 = pneg %p18
  $region19: #{basic_block_forward.2} parent=0 // pred_check_branch
    %21 = sbr.rel (%p19) target = $region21
  $region20: #{basic_block_forward.2} parent=0 // pred_region
    %22 = vst [vmem:[#allocation2] sm:$0xff] 0.0
    %23 = vst [vmem:[#allocation2 + $0x8] sm:$0xff] 0.0
    %24 = vst [vmem:[#allocation2 + $0x10] sm:$0xff] 0.0
    %25 = vst [vmem:[#allocation2 + $0x18] sm:$0xff] 0.0
    %26 = vst [vmem:[#allocation2 + $0x20] sm:$0xff] 0.0
    %27 = vst [vmem:[#allocation2 + $0x28] sm:$0xff] 0.0
    %28 = vst [vmem:[#allocation2 + $0x30] sm:$0xff] 0.0
    %29 = vst [vmem:[#allocation2 + $0x38] sm:$0xff] 0.0
    %30 = vst [vmem:[#allocation2 + $0x40] sm:$0xff] 0.0
    %31 = vst [vmem:[#allocation2 + $0x48] sm:$0xff] 0.0
    %32 = vst [vmem:[#allocation2 + $0x50] sm:$0xff] 0.0
    %33 = vst [vmem:[#allocation2 + $0x58] sm:$0xff] 0.0
    %34 = vst [vmem:[#allocation2 + $0x60] sm:$0xff] 0.0
    %35 = vst [vmem:[#allocation2 + $0x68] sm:$0xff] 0.0
    %36 = vst [vmem:[#allocation2 + $0x70] sm:$0xff] 0.0
    %37 = vst [vmem:[#allocation2 + $0x78] sm:$0xff] 0.0
  $region21: #{basic_block_forward.2} parent=0 // pred_fallthru
    _
  %v38 = vld [vmem:[#allocation2] sm:$0xff]
  %v39 = vld [vmem:[#allocation2 + $0x8] sm:$0xff]
  %v40 = vld [vmem:[#allocation2 + $0x10] sm:$0xff]
  %v41 = vld [vmem:[#allocation2 + $0x18] sm:$0xff]
  %v42 = vld [vmem:[#allocation2 + $0x20] sm:$0xff]
  %v43 = vld [vmem:[#allocation2 + $0x28] sm:$0xff]
  %v44 = vld [vmem:[#allocation2 + $0x30] sm:$0xff]
  %v45 = vld [vmem:[#allocation2 + $0x38] sm:$0xff]
  %v46 = vld [vmem:[#allocation2 + $0x40] sm:$0xff]
  %v47 = vld [vmem:[#allocation2 + $0x48] sm:$0xff]
  %v48 = vld [vmem:[#allocation2 + $0x50] sm:$0xff]
  %v49 = vld [vmem:[#allocation2 + $0x58] sm:$0xff]
  %v50 = vld [vmem:[#allocation2 + $0x60] sm:$0xff]
  %v51 = vld [vmem:[#allocation2 + $0x68] sm:$0xff]
  %v52 = vld [vmem:[#allocation2 + $0x70] sm:$0xff]
  %v53 = vld [vmem:[#allocation2 + $0x78] sm:$0xff]
  %v54 = vld [vmem:[%s0] sm:$0xf]
  %v55 = vld [vmem:[%s0 + $0x4] sm:$0xf]
  %v56 = vld [vmem:[%s0 + $0x8] sm:$0xf]
  %v57 = vld [vmem:[%s0 + $0xc] sm:$0xf]
  %v58 = vld [vmem:[%s0 + $0x10] sm:$0xf]
  %v59 = vld [vmem:[%s0 + $0x14] sm:$0xf]
  %v60 = vld [vmem:[%s0 + $0x18] sm:$0xf]
  %v61 = vld [vmem:[%s0 + $0x1c] sm:$0xf]
  %v62 = vld [vmem:[%s0 + $0x20] sm:$0xf]
  %v63 = vld [vmem:[%s0 + $0x24] sm:$0xf]
  %v64 = vld [vmem:[%s0 + $0x28] sm:$0xf]
  %v65 = vld [vmem:[%s0 + $0x2c] sm:$0xf]
  %v66 = vld [vmem:[%s0 + $0x30] sm:$0xf]
  %v67 = vld [vmem:[%s0 + $0x34] sm:$0xf]
  %v68 = vld [vmem:[%s0 + $0x38] sm:$0xf]
  %v69 = vld [vmem:[%s0 + $0x3c] sm:$0xf]
  %v70 = vld [vmem:[%s1] sm:$0xf]
  %v71 = vld [vmem:[%s1 + $0x4] sm:$0xf]
  %v72 = vld [vmem:[%s1 + $0x8] sm:$0xf]
  %v73 = vld [vmem:[%s1 + $0xc] sm:$0xf]
  %v74 = vld [vmem:[%s1 + $0x10] sm:$0xf]
  %v75 = vld [vmem:[%s1 + $0x14] sm:$0xf]
  %v76 = vld [vmem:[%s1 + $0x18] sm:$0xf]
  %v77 = vld [vmem:[%s1 + $0x1c] sm:$0xf]
  %v78 = vld [vmem:[%s1 + $0x20] sm:$0xf]
  %v79 = vld [vmem:[%s1 + $0x24] sm:$0xf]
  %v80 = vld [vmem:[%s1 + $0x28] sm:$0xf]
  %v81 = vld [vmem:[%s1 + $0x2c] sm:$0xf]
  %v82 = vld [vmem:[%s1 + $0x30] sm:$0xf]
  %v83 = vld [vmem:[%s1 + $0x34] sm:$0xf]
  %v84 = vld [vmem:[%s1 + $0x38] sm:$0xf]
  %v85 = vld [vmem:[%s1 + $0x3c] sm:$0xf]
  %v102 = vunpack.c.l.b16 %v54
  %v103 = vunpack.c.l.b16 %v55
  %v104 = vunpack.c.l.b16 %v56
  %v105 = vunpack.c.l.b16 %v57
  %v106 = vunpack.c.l.b16 %v58
  %v107 = vunpack.c.l.b16 %v59
  %v108 = vunpack.c.l.b16 %v60
  %v109 = vunpack.c.l.b16 %v61
  %v110 = vunpack.c.l.b16 %v62
  %v111 = vunpack.c.l.b16 %v63
  %v112 = vunpack.c.l.b16 %v64
  %v113 = vunpack.c.l.b16 %v65
  %v114 = vunpack.c.l.b16 %v66
  %v115 = vunpack.c.l.b16 %v67
  %v116 = vunpack.c.l.b16 %v68
  %v117 = vunpack.c.l.b16 %v69
  %v118 = vpack.c.b16 %v103, %v102
  %v119 = vpack.c.b16 %v105, %v104
  %v120 = vpack.c.b16 %v107, %v106
  %v121 = vpack.c.b16 %v109, %v108
  %v122 = vpack.c.b16 %v111, %v110
  %v123 = vpack.c.b16 %v113, %v112
  %v124 = vpack.c.b16 %v115, %v114
  %v125 = vpack.c.b16 %v117, %v116
  %v150 = vunpack.c.l.b16 %v70
  %v151 = vunpack.c.l.b16 %v71
  %v152 = vunpack.c.l.b16 %v72
  %v153 = vunpack.c.l.b16 %v73
  %v154 = vunpack.c.l.b16 %v74
  %v155 = vunpack.c.l.b16 %v75
  %v156 = vunpack.c.l.b16 %v76
  %v157 = vunpack.c.l.b16 %v77
  %v158 = vunpack.c.l.b16 %v78
  %v159 = vunpack.c.l.b16 %v79
  %v160 = vunpack.c.l.b16 %v80
  %v161 = vunpack.c.l.b16 %v81
  %v162 = vunpack.c.l.b16 %v82
  %v163 = vunpack.c.l.b16 %v83
  %v164 = vunpack.c.l.b16 %v84
  %v165 = vunpack.c.l.b16 %v85
  %v166 = vpack.c.b16 %v151, %v150
  %v167 = vpack.c.b16 %v153, %v152
  %v168 = vpack.c.b16 %v155, %v154
  %v169 = vpack.c.b16 %v157, %v156
  %v170 = vpack.c.b16 %v159, %v158
  %v171 = vpack.c.b16 %v161, %v160
  %v172 = vpack.c.b16 %v163, %v162
  %v173 = vpack.c.b16 %v165, %v164
  %182 = vmatprep.subr.bf16.mxu0 0
  %183 = vmatpush1.bf16.msra.mxu0 %v166
  %184 = vmatprep.subr.bf16.mxu0 0
  %185 = vmatpush1.bf16.msra.mxu0 %v167
  %186 = vmatprep.subr.bf16.mxu0 0
  %187 = vmatpush1.bf16.msra.mxu0 %v168
  %188 = vmatprep.subr.bf16.mxu0 0
  %189 = vmatpush1.bf16.msra.mxu0 %v169
  %190 = vmatprep.subr.bf16.mxu0 0
  %191 = vmatpush1.bf16.msra.mxu0 %v170
  %192 = vmatprep.subr.bf16.mxu0 0
  %193 = vmatpush1.bf16.msra.mxu0 %v171
  %194 = vmatprep.subr.bf16.mxu0 0
  %195 = vmatpush1.bf16.msra.mxu0 %v172
  %196 = vmatprep.subr.bf16.mxu0 0
  %197 = vmatpush1.bf16.msra.mxu0 %v173
  %198 = vmatprep.subr.bf16.mxu0 0
  %199 = vmatpush1.bf16.msra.mxu0 0
  %200 = vmatprep.subr.bf16.mxu0 0
  %201 = vmatpush1.bf16.msra.mxu0 0
  %202 = vmatprep.subr.bf16.mxu0 0
  %203 = vmatpush1.bf16.msra.mxu0 0
  %204 = vmatprep.subr.bf16.mxu0 0
  %205 = vmatpush1.bf16.msra.mxu0 0
  %206 = vmatprep.subr.bf16.mxu0 0
  %207 = vmatpush1.bf16.msra.mxu0 0
  %208 = vmatprep.subr.bf16.mxu0 0
  %209 = vmatpush1.bf16.msra.mxu0 0
  %210 = vmatprep.subr.bf16.mxu0 0
  %211 = vmatpush1.bf16.msra.mxu0 0
  %212 = vmatprep.subr.bf16.mxu0 0
  %213 = vmatpush1.bf16.msra.mxu0 0
  %214 = vmatprep.mubr.bf16.mxu0 0
  %215 = vmatmul.mubr.bf16.gmra.mrb[0].mxu0 %v118
  %v216 = vpop.f32.mrb[0].mxu0
  %v217 = vadd.f32 0.0, %v216
  %v218 = vpop.f32.mrb[0].mxu0
  %v219 = vpop.f32.mrb[0].mxu0
  %v220 = vadd.f32 0.0, %v219
  %v221 = vpop.f32.mrb[0].mxu0
  %222 = vmatprep.mubr.bf16.mxu0 0
  %223 = vmatmul.mubr.bf16.gmra.mrb[0].mxu0 %v119
  %v224 = vpop.f32.mrb[0].mxu0
  %v225 = vadd.f32 0.0, %v224
  %v226 = vpop.f32.mrb[0].mxu0
  %v227 = vpop.f32.mrb[0].mxu0
  %v228 = vadd.f32 0.0, %v227
  %v229 = vpop.f32.mrb[0].mxu0
  %230 = vmatprep.mubr.bf16.mxu0 0
  %231 = vmatmul.mubr.bf16.gmra.mrb[0].mxu0 %v120
  %v232 = vpop.f32.mrb[0].mxu0
  %v233 = vadd.f32 0.0, %v232
  %v234 = vpop.f32.mrb[0].mxu0
  %v235 = vpop.f32.mrb[0].mxu0
  %v236 = vadd.f32 0.0, %v235
  %v237 = vpop.f32.mrb[0].mxu0
  %238 = vmatprep.mubr.bf16.mxu0 0
  %239 = vmatmul.mubr.bf16.gmra.mrb[0].mxu0 %v121
  %v240 = vpop.f32.mrb[0].mxu0
  %v241 = vadd.f32 0.0, %v240
  %v242 = vpop.f32.mrb[0].mxu0
  %v243 = vpop.f32.mrb[0].mxu0
  %v244 = vadd.f32 0.0, %v243
  %v245 = vpop.f32.mrb[0].mxu0
  %246 = vmatprep.mubr.bf16.mxu0 0
  %247 = vmatmul.mubr.bf16.gmra.mrb[0].mxu0 %v122
  %v248 = vpop.f32.mrb[0].mxu0
  %v249 = vadd.f32 0.0, %v248
  %v250 = vpop.f32.mrb[0].mxu0
  %v251 = vpop.f32.mrb[0].mxu0
  %v252 = vadd.f32 0.0, %v251
  %v253 = vpop.f32.mrb[0].mxu0
  %254 = vmatprep.mubr.bf16.mxu0 0
  %255 = vmatmul.mubr.bf16.gmra.mrb[0].mxu0 %v123
  %v256 = vpop.f32.mrb[0].mxu0
  %v257 = vadd.f32 0.0, %v256
  %v258 = vpop.f32.mrb[0].mxu0
  %v259 = vpop.f32.mrb[0].mxu0
  %v260 = vadd.f32 0.0, %v259
  %v261 = vpop.f32.mrb[0].mxu0
  %262 = vmatprep.mubr.bf16.mxu0 0
  %263 = vmatmul.mubr.bf16.gmra.mrb[0].mxu0 %v124
  %v264 = vpop.f32.mrb[0].mxu0
  %v265 = vadd.f32 0.0, %v264
  %v266 = vpop.f32.mrb[0].mxu0
  %v267 = vpop.f32.mrb[0].mxu0
  %v268 = vadd.f32 0.0, %v267
  %v269 = vpop.f32.mrb[0].mxu0
  %270 = vmatprep.mubr.bf16.mxu0 0
  %271 = vmatmul.mubr.bf16.gmra.mrb[0].mxu0 %v125
  %v272 = vpop.f32.mrb[0].mxu0
  %v273 = vadd.f32 0.0, %v272
  %v274 = vpop.f32.mrb[0].mxu0
  %v275 = vpop.f32.mrb[0].mxu0
  %v276 = vadd.f32 0.0, %v275
  %v277 = vpop.f32.mrb[0].mxu0
  %278 = vdwg.mxu0
  %v279 = vadd.f32 %v38, %v217
  %v280 = vadd.f32 %v39, %v220
  %v281 = vadd.f32 %v40, %v225
  %v282 = vadd.f32 %v41, %v228
  %v283 = vadd.f32 %v42, %v233
  %v284 = vadd.f32 %v43, %v236
  %v285 = vadd.f32 %v44, %v241
  %v286 = vadd.f32 %v45, %v244
  %v287 = vadd.f32 %v46, %v249
  %v288 = vadd.f32 %v47, %v252
  %v289 = vadd.f32 %v48, %v257
  %v290 = vadd.f32 %v49, %v260
  %v291 = vadd.f32 %v50, %v265
  %v292 = vadd.f32 %v51, %v268
  %v293 = vadd.f32 %v52, %v273
  %v294 = vadd.f32 %v53, %v276
  %295 = vst [vmem:[#allocation2] sm:$0xff] %v279
  %296 = vst [vmem:[#allocation2 + $0x8] sm:$0xff] %v280
  %297 = vst [vmem:[#allocation2 + $0x10] sm:$0xff] %v281
  %298 = vst [vmem:[#allocation2 + $0x18] sm:$0xff] %v282
  %299 = vst [vmem:[#allocation2 + $0x20] sm:$0xff] %v283
  %300 = vst [vmem:[#allocation2 + $0x28] sm:$0xff] %v284
  %301 = vst [vmem:[#allocation2 + $0x30] sm:$0xff] %v285
  %302 = vst [vmem:[#allocation2 + $0x38] sm:$0xff] %v286
  %303 = vst [vmem:[#allocation2 + $0x40] sm:$0xff] %v287
  %304 = vst [vmem:[#allocation2 + $0x48] sm:$0xff] %v288
  %305 = vst [vmem:[#allocation2 + $0x50] sm:$0xff] %v289
  %306 = vst [vmem:[#allocation2 + $0x58] sm:$0xff] %v290
  %307 = vst [vmem:[#allocation2 + $0x60] sm:$0xff] %v291
  %308 = vst [vmem:[#allocation2 + $0x68] sm:$0xff] %v292
  %309 = vst [vmem:[#allocation2 + $0x70] sm:$0xff] %v293
  %310 = vst [vmem:[#allocation2 + $0x78] sm:$0xff] %v294
  // Predicated region
  $region22: #{basic_block_forward.2} parent=0 // pred_check
    %p311 = pneg %p18
  $region23: #{basic_block_forward.2} parent=0 // pred_check_branch
    %313 = sbr.rel (%p311) target = $region25
  $region24: #{basic_block_forward.2} parent=0 // pred_region
    %v314 = vld [vmem:[#allocation2] sm:$0xff]
    %v315 = vld [vmem:[#allocation2 + $0x8] sm:$0xff]
    %v316 = vld [vmem:[#allocation2 + $0x10] sm:$0xff]
    %v317 = vld [vmem:[#allocation2 + $0x18] sm:$0xff]
    %v318 = vld [vmem:[#allocation2 + $0x20] sm:$0xff]
    %v319 = vld [vmem:[#allocation2 + $0x28] sm:$0xff]
    %v320 = vld [vmem:[#allocation2 + $0x30] sm:$0xff]
    %v321 = vld [vmem:[#allocation2 + $0x38] sm:$0xff]
    %v322 = vld [vmem:[#allocation2 + $0x40] sm:$0xff]
    %v323 = vld [vmem:[#allocation2 + $0x48] sm:$0xff]
    %v324 = vld [vmem:[#allocation2 + $0x50] sm:$0xff]
    %v325 = vld [vmem:[#allocation2 + $0x58] sm:$0xff]
    %v326 = vld [vmem:[#allocation2 + $0x60] sm:$0xff]
    %v327 = vld [vmem:[#allocation2 + $0x68] sm:$0xff]
    %v328 = vld [vmem:[#allocation2 + $0x70] sm:$0xff]
    %v329 = vld [vmem:[#allocation2 + $0x78] sm:$0xff]
    %v330 = vld [vmem:[%s2] sm:$0x1]
    %v332 = vlaneseq
    %v333 = vshrl.u32 %v332, 7
    %v334 = vsub.s32 0, %v333
    %v335 = vrot.slane %v330, %v334
    %v337 = vmul.f32 %v314, %v335
    %v338 = vmul.f32 %v315, %v335
    %v339 = vmul.f32 %v316, %v335
    %v340 = vmul.f32 %v317, %v335
    %v341 = vmul.f32 %v318, %v335
    %v342 = vmul.f32 %v319, %v335
    %v343 = vmul.f32 %v320, %v335
    %v344 = vmul.f32 %v321, %v335
    %v345 = vmul.f32 %v322, %v335
    %v346 = vmul.f32 %v323, %v335
    %v347 = vmul.f32 %v324, %v335
    %v348 = vmul.f32 %v325, %v335
    %v349 = vmul.f32 %v326, %v335
    %v350 = vmul.f32 %v327, %v335
    %v351 = vmul.f32 %v328, %v335
    %v352 = vmul.f32 %v329, %v335
    %v353 = vld [vmem:[%s3] sm:$0x1]
    %v355 = vlaneseq
    %v356 = vshrl.u32 %v355, 7
    %v357 = vsub.s32 0, %v356
    %v358 = vrot.slane %v353, %v357
    %v360 = vadd.f32 %v337, %v358
    %v361 = vadd.f32 %v338, %v358
    %v362 = vadd.f32 %v339, %v358
    %v363 = vadd.f32 %v340, %v358
    %v364 = vadd.f32 %v341, %v358
    %v365 = vadd.f32 %v342, %v358
    %v366 = vadd.f32 %v343, %v358
    %v367 = vadd.f32 %v344, %v358
    %v368 = vadd.f32 %v345, %v358
    %v369 = vadd.f32 %v346, %v358
    %v370 = vadd.f32 %v347, %v358
    %v371 = vadd.f32 %v348, %v358
    %v372 = vadd.f32 %v349, %v358
    %v373 = vadd.f32 %v350, %v358
    %v374 = vadd.f32 %v351, %v358
    %v375 = vadd.f32 %v352, %v358
    %v376 = vmax.f32 %v360, 0.0
    %v377 = vmax.f32 %v361, 0.0
    %v378 = vmax.f32 %v362, 0.0
    %v379 = vmax.f32 %v363, 0.0
    %v380 = vmax.f32 %v364, 0.0
    %v381 = vmax.f32 %v365, 0.0
    %v382 = vmax.f32 %v366, 0.0
    %v383 = vmax.f32 %v367, 0.0
    %v384 = vmax.f32 %v368, 0.0
    %v385 = vmax.f32 %v369, 0.0
    %v386 = vmax.f32 %v370, 0.0
    %v387 = vmax.f32 %v371, 0.0
    %v388 = vmax.f32 %v372, 0.0
    %v389 = vmax.f32 %v373, 0.0
    %v390 = vmax.f32 %v374, 0.0
    %v391 = vmax.f32 %v375, 0.0
    %v392 = vpack.c.bf16 %v377, %v376
    %v393 = vpack.c.bf16 %v379, %v378
    %v394 = vpack.c.bf16 %v381, %v380
    %v395 = vpack.c.bf16 %v383, %v382
    %v396 = vpack.c.bf16 %v385, %v384
    %v397 = vpack.c.bf16 %v387, %v386
    %v398 = vpack.c.bf16 %v389, %v388
    %v399 = vpack.c.bf16 %v391, %v390
    %v408 = vunpack.c.l.b16 %v392
    %v409 = vunpack.c.h.b16 %v392
    %v410 = vunpack.c.l.b16 %v393
    %v411 = vunpack.c.h.b16 %v393
    %v412 = vunpack.c.l.b16 %v394
    %v413 = vunpack.c.h.b16 %v394
    %v414 = vunpack.c.l.b16 %v395
    %v415 = vunpack.c.h.b16 %v395
    %v416 = vunpack.c.l.b16 %v396
    %v417 = vunpack.c.h.b16 %v396
    %v418 = vunpack.c.l.b16 %v397
    %v419 = vunpack.c.h.b16 %v397
    %v420 = vunpack.c.l.b16 %v398
    %v421 = vunpack.c.h.b16 %v398
    %v422 = vunpack.c.l.b16 %v399
    %v423 = vunpack.c.h.b16 %v399
    %v424 = vpack.c.b16 %v408, %v408
    %v425 = vpack.c.b16 %v409, %v409
    %v426 = vpack.c.b16 %v410, %v410
    %v427 = vpack.c.b16 %v411, %v411
    %v428 = vpack.c.b16 %v412, %v412
    %v429 = vpack.c.b16 %v413, %v413
    %v430 = vpack.c.b16 %v414, %v414
    %v431 = vpack.c.b16 %v415, %v415
    %v432 = vpack.c.b16 %v416, %v416
    %v433 = vpack.c.b16 %v417, %v417
    %v434 = vpack.c.b16 %v418, %v418
    %v435 = vpack.c.b16 %v419, %v419
    %v436 = vpack.c.b16 %v420, %v420
    %v437 = vpack.c.b16 %v421, %v421
    %v438 = vpack.c.b16 %v422, %v422
    %v439 = vpack.c.b16 %v423, %v423
    %456 = vst [vmem:[%s4] sm:$0xf] %v424
    %457 = vst [vmem:[%s4 + $0x4] sm:$0xf] %v425
    %458 = vst [vmem:[%s4 + $0x8] sm:$0xf] %v426
    %459 = vst [vmem:[%s4 + $0xc] sm:$0xf] %v427
    %460 = vst [vmem:[%s4 + $0x10] sm:$0xf] %v428
    %461 = vst [vmem:[%s4 + $0x14] sm:$0xf] %v429
    %462 = vst [vmem:[%s4 + $0x18] sm:$0xf] %v430
    %463 = vst [vmem:[%s4 + $0x1c] sm:$0xf] %v431
    %464 = vst [vmem:[%s4 + $0x20] sm:$0xf] %v432
    %465 = vst [vmem:[%s4 + $0x24] sm:$0xf] %v433
    %466 = vst [vmem:[%s4 + $0x28] sm:$0xf] %v434
    %467 = vst [vmem:[%s4 + $0x2c] sm:$0xf] %v435
    %468 = vst [vmem:[%s4 + $0x30] sm:$0xf] %v436
    %469 = vst [vmem:[%s4 + $0x34] sm:$0xf] %v437
    %470 = vst [vmem:[%s4 + $0x38] sm:$0xf] %v438
    %471 = vst [vmem:[%s4 + $0x3c] sm:$0xf] %v439
  $region25: #{basic_block_forward.2} parent=0 // pred_fallthru
    _
  // Predicated region
  $region26: #{basic_block_forward.2} parent=0 // pred_check
    _
  $region27: #{basic_block_forward.2} parent=0 // pred_check_branch
    %473 = sbr.rel (0) target = $region29
  $region28: #{basic_block_forward.2} parent=0 // pred_region
    _
  $region29: #{basic_block_forward.2} parent=0 // pred_fallthru
    _
  // Predicated region
  $region30: #{basic_block_forward.2} parent=0 // pred_check
    _
  $region31: #{basic_block_forward.2} parent=0 // pred_check_branch
    %475 = sbr.rel (0) target = $region33
  $region32: #{basic_block_forward.2} parent=0 // pred_region
    _
  $region33: #{basic_block_forward.2} parent=0 // pred_fallthru
    _

// kernel: basic_block_forward.3
$region0: #{basic_block_forward.3}
  #allocation0 [shape = 'u32[]', space=smem, size = 0x4, offset = 0x4, fixed_abs, tag = 'smem constant byte address 0x4 - core index']
  #allocation1 [shape = 'u32[144,128]{1,0:T(1,128)}', space=vmem, size = 0x12000, scoped, tag = 'internal scratch']
  #allocation2 [shape = 'f32[128,128]{1,0:T(8,128)}', space=vmem, size = 0x10000, scoped, tag = 'scratch operand']
  %s0 = inlined_call_operand.vmem [shape: bf16[128,128], index: 0, kind: input, shape index: {}]
  %s1 = inlined_call_operand.vmem [shape: bf16[128,128], index: 1, kind: input, shape index: {}]
  %s2 = inlined_call_operand.vmem [shape: f32[1,128], index: 2, kind: input, shape index: {}]
  %s3 = inlined_call_operand.vmem [shape: f32[1,128], index: 3, kind: input, shape index: {}]
  %s4 = inlined_call_operand.vmem [shape: bf16[128,128], index: 4, kind: input, shape index: {}]
  %s5 = inlined_call_operand.vmem [shape: bf16[128,128], index: 5, kind: input, shape index: {}]
  %s6 = inlined_call_operand.vmem [shape: f32[1,128], index: 6, kind: input, shape index: {}]
  %s7 = inlined_call_operand.vmem [shape: f32[1,128], index: 7, kind: input, shape index: {}]
  %s8 = inlined_call_operand.vmem [shape: f32[128,128], index: 8, kind: output, shape index: {}]
  %s9 = sld [smem:[#allocation0]]
  $region50: #{basic_block_forward.3} parent=0
    _
  %s11 = ssub.s32 1, %s9
  %s12 = scalar_select 0, %s11, %s9
  // Predicated region
  $region2: #{basic_block_forward.3} parent=0 // pred_check
    _
  $region3: #{basic_block_forward.3} parent=0 // pred_check_branch
    %14 = sbr.rel (0) target = $region5
  $region4: #{basic_block_forward.3} parent=0 // pred_region
    _
  $region5: #{basic_block_forward.3} parent=0 // pred_fallthru
    _
  // Predicated region
  $region6: #{basic_block_forward.3} parent=0 // pred_check
    _
  $region7: #{basic_block_forward.3} parent=0 // pred_check_branch
    %16 = sbr.rel (0) target = $region9
  $region8: #{basic_block_forward.3} parent=0 // pred_region
    _
  $region9: #{basic_block_forward.3} parent=0 // pred_fallthru
    _
  // Predicated region
  $region10: #{basic_block_forward.3} parent=0 // pred_check
    _
  $region11: #{basic_block_forward.3} parent=0 // pred_check_branch
    %18 = sbr.rel (0) target = $region13
  $region12: #{basic_block_forward.3} parent=0 // pred_region
    _
  $region13: #{basic_block_forward.3} parent=0 // pred_fallthru
    _
  // Predicated region
  $region14: #{basic_block_forward.3} parent=0 // pred_check
    _
  $region15: #{basic_block_forward.3} parent=0 // pred_check_branch
    %20 = sbr.rel (0) target = $region17
  $region16: #{basic_block_forward.3} parent=0 // pred_region
    _
  $region17: #{basic_block_forward.3} parent=0 // pred_fallthru
    _
  // Predicated region
  $region18: #{basic_block_forward.3} parent=0 // pred_check
    _
  $region19: #{basic_block_forward.3} parent=0 // pred_check_branch
    %22 = sbr.rel (0) target = $region21
  $region20: #{basic_block_forward.3} parent=0 // pred_region
    _
  $region21: #{basic_block_forward.3} parent=0 // pred_fallthru
    _
  // Predicated region
  $region22: #{basic_block_forward.3} parent=0 // pred_check
    _
  $region23: #{basic_block_forward.3} parent=0 // pred_check_branch
    %24 = sbr.rel (0) target = $region25
  $region24: #{basic_block_forward.3} parent=0 // pred_region
    _
  $region25: #{basic_block_forward.3} parent=0 // pred_fallthru
    _
  // Predicated region
  $region26: #{basic_block_forward.3} parent=0 // pred_check
    _
  $region27: #{basic_block_forward.3} parent=0 // pred_check_branch
    %26 = sbr.rel (0) target = $region29
  $region28: #{basic_block_forward.3} parent=0 // pred_region
    _
  $region29: #{basic_block_forward.3} parent=0 // pred_fallthru
    _
  // Predicated region
  $region30: #{basic_block_forward.3} parent=0 // pred_check
    _
  $region31: #{basic_block_forward.3} parent=0 // pred_check_branch
    %28 = sbr.rel (0) target = $region33
  $region32: #{basic_block_forward.3} parent=0 // pred_region
    _
  $region33: #{basic_block_forward.3} parent=0 // pred_fallthru
    _
  %p30 = scmp.eq.s32.totalorder 0, 0
  // Predicated region
  $region34: #{basic_block_forward.3} parent=0 // pred_check
    %p31 = pneg %p30
  $region35: #{basic_block_forward.3} parent=0 // pred_check_branch
    %33 = sbr.rel (%p31) target = $region37
  $region36: #{basic_block_forward.3} parent=0 // pred_region
    %34 = vst [vmem:[#allocation2] sm:$0xff] 0.0
    %35 = vst [vmem:[#allocation2 + $0x8] sm:$0xff] 0.0
    %36 = vst [vmem:[#allocation2 + $0x10] sm:$0xff] 0.0
    %37 = vst [vmem:[#allocation2 + $0x18] sm:$0xff] 0.0
    %38 = vst [vmem:[#allocation2 + $0x20] sm:$0xff] 0.0
    %39 = vst [vmem:[#allocation2 + $0x28] sm:$0xff] 0.0
    %40 = vst [vmem:[#allocation2 + $0x30] sm:$0xff] 0.0
    %41 = vst [vmem:[#allocation2 + $0x38] sm:$0xff] 0.0
    %42 = vst [vmem:[#allocation2 + $0x40] sm:$0xff] 0.0
    %43 = vst [vmem:[#allocation2 + $0x48] sm:$0xff] 0.0
    %44 = vst [vmem:[#allocation2 + $0x50] sm:$0xff] 0.0
    %45 = vst [vmem:[#allocation2 + $0x58] sm:$0xff] 0.0
    %46 = vst [vmem:[#allocation2 + $0x60] sm:$0xff] 0.0
    %47 = vst [vmem:[#allocation2 + $0x68] sm:$0xff] 0.0
    %48 = vst [vmem:[#allocation2 + $0x70] sm:$0xff] 0.0
    %49 = vst [vmem:[#allocation2 + $0x78] sm:$0xff] 0.0
  $region37: #{basic_block_forward.3} parent=0 // pred_fallthru
    _
  %v50 = vld [vmem:[#allocation2] sm:$0xff]
  %v51 = vld [vmem:[#allocation2 + $0x8] sm:$0xff]
  %v52 = vld [vmem:[#allocation2 + $0x10] sm:$0xff]
  %v53 = vld [vmem:[#allocation2 + $0x18] sm:$0xff]
  %v54 = vld [vmem:[#allocation2 + $0x20] sm:$0xff]
  %v55 = vld [vmem:[#allocation2 + $0x28] sm:$0xff]
  %v56 = vld [vmem:[#allocation2 + $0x30] sm:$0xff]
  %v57 = vld [vmem:[#allocation2 + $0x38] sm:$0xff]
  %v58 = vld [vmem:[#allocation2 + $0x40] sm:$0xff]
  %v59 = vld [vmem:[#allocation2 + $0x48] sm:$0xff]
  %v60 = vld [vmem:[#allocation2 + $0x50] sm:$0xff]
  %v61 = vld [vmem:[#allocation2 + $0x58] sm:$0xff]
  %v62 = vld [vmem:[#allocation2 + $0x60] sm:$0xff]
  %v63 = vld [vmem:[#allocation2 + $0x68] sm:$0xff]
  %v64 = vld [vmem:[#allocation2 + $0x70] sm:$0xff]
  %v65 = vld [vmem:[#allocation2 + $0x78] sm:$0xff]
  %v66 = vld [vmem:[%s0] sm:$0xf]
  %v67 = vld [vmem:[%s0 + $0x4] sm:$0xf]
  %v68 = vld [vmem:[%s0 + $0x8] sm:$0xf]
  %v69 = vld [vmem:[%s0 + $0xc] sm:$0xf]
  %v70 = vld [vmem:[%s0 + $0x10] sm:$0xf]
  %v71 = vld [vmem:[%s0 + $0x14] sm:$0xf]
  %v72 = vld [vmem:[%s0 + $0x18] sm:$0xf]
  %v73 = vld [vmem:[%s0 + $0x1c] sm:$0xf]
  %v74 = vld [vmem:[%s0 + $0x20] sm:$0xf]
  %v75 = vld [vmem:[%s0 + $0x24] sm:$0xf]
  %v76 = vld [vmem:[%s0 + $0x28] sm:$0xf]
  %v77 = vld [vmem:[%s0 + $0x2c] sm:$0xf]
  %v78 = vld [vmem:[%s0 + $0x30] sm:$0xf]
  %v79 = vld [vmem:[%s0 + $0x34] sm:$0xf]
  %v80 = vld [vmem:[%s0 + $0x38] sm:$0xf]
  %v81 = vld [vmem:[%s0 + $0x3c] sm:$0xf]
  %v82 = vld [vmem:[%s1] sm:$0xf]
  %v83 = vld [vmem:[%s1 + $0x4] sm:$0xf]
  %v84 = vld [vmem:[%s1 + $0x8] sm:$0xf]
  %v85 = vld [vmem:[%s1 + $0xc] sm:$0xf]
  %v86 = vld [vmem:[%s1 + $0x10] sm:$0xf]
  %v87 = vld [vmem:[%s1 + $0x14] sm:$0xf]
  %v88 = vld [vmem:[%s1 + $0x18] sm:$0xf]
  %v89 = vld [vmem:[%s1 + $0x1c] sm:$0xf]
  %v90 = vld [vmem:[%s1 + $0x20] sm:$0xf]
  %v91 = vld [vmem:[%s1 + $0x24] sm:$0xf]
  %v92 = vld [vmem:[%s1 + $0x28] sm:$0xf]
  %v93 = vld [vmem:[%s1 + $0x2c] sm:$0xf]
  %v94 = vld [vmem:[%s1 + $0x30] sm:$0xf]
  %v95 = vld [vmem:[%s1 + $0x34] sm:$0xf]
  %v96 = vld [vmem:[%s1 + $0x38] sm:$0xf]
  %v97 = vld [vmem:[%s1 + $0x3c] sm:$0xf]
  %v114 = vunpack.c.l.b16 %v66
  %v115 = vunpack.c.l.b16 %v67
  %v116 = vunpack.c.l.b16 %v68
  %v117 = vunpack.c.l.b16 %v69
  %v118 = vunpack.c.l.b16 %v70
  %v119 = vunpack.c.l.b16 %v71
  %v120 = vunpack.c.l.b16 %v72
  %v121 = vunpack.c.l.b16 %v73
  %v122 = vunpack.c.l.b16 %v74
  %v123 = vunpack.c.l.b16 %v75
  %v124 = vunpack.c.l.b16 %v76
  %v125 = vunpack.c.l.b16 %v77
  %v126 = vunpack.c.l.b16 %v78
  %v127 = vunpack.c.l.b16 %v79
  %v128 = vunpack.c.l.b16 %v80
  %v129 = vunpack.c.l.b16 %v81
  %v130 = vpack.c.b16 %v115, %v114
  %v131 = vpack.c.b16 %v117, %v116
  %v132 = vpack.c.b16 %v119, %v118
  %v133 = vpack.c.b16 %v121, %v120
  %v134 = vpack.c.b16 %v123, %v122
  %v135 = vpack.c.b16 %v125, %v124
  %v136 = vpack.c.b16 %v127, %v126
  %v137 = vpack.c.b16 %v129, %v128
  %v162 = vunpack.c.l.b16 %v82
  %v163 = vunpack.c.l.b16 %v83
  %v164 = vunpack.c.l.b16 %v84
  %v165 = vunpack.c.l.b16 %v85
  %v166 = vunpack.c.l.b16 %v86
  %v167 = vunpack.c.l.b16 %v87
  %v168 = vunpack.c.l.b16 %v88
  %v169 = vunpack.c.l.b16 %v89
  %v170 = vunpack.c.l.b16 %v90
  %v171 = vunpack.c.l.b16 %v91
  %v172 = vunpack.c.l.b16 %v92
  %v173 = vunpack.c.l.b16 %v93
  %v174 = vunpack.c.l.b16 %v94
  %v175 = vunpack.c.l.b16 %v95
  %v176 = vunpack.c.l.b16 %v96
  %v177 = vunpack.c.l.b16 %v97
  %v178 = vpack.c.b16 %v163, %v162
  %v179 = vpack.c.b16 %v165, %v164
  %v180 = vpack.c.b16 %v167, %v166
  %v181 = vpack.c.b16 %v169, %v168
  %v182 = vpack.c.b16 %v171, %v170
  %v183 = vpack.c.b16 %v173, %v172
  %v184 = vpack.c.b16 %v175, %v174
  %v185 = vpack.c.b16 %v177, %v176
  %194 = vmatprep.subr.bf16.mxu0 0
  %195 = vmatpush1.bf16.msra.mxu0 %v178
  %196 = vmatprep.subr.bf16.mxu0 0
  %197 = vmatpush1.bf16.msra.mxu0 %v179
  %198 = vmatprep.subr.bf16.mxu0 0
  %199 = vmatpush1.bf16.msra.mxu0 %v180
  %200 = vmatprep.subr.bf16.mxu0 0
  %201 = vmatpush1.bf16.msra.mxu0 %v181
  %202 = vmatprep.subr.bf16.mxu0 0
  %203 = vmatpush1.bf16.msra.mxu0 %v182
  %204 = vmatprep.subr.bf16.mxu0 0
  %205 = vmatpush1.bf16.msra.mxu0 %v183
  %206 = vmatprep.subr.bf16.mxu0 0
  %207 = vmatpush1.bf16.msra.mxu0 %v184
  %208 = vmatprep.subr.bf16.mxu0 0
  %209 = vmatpush1.bf16.msra.mxu0 %v185
  %210 = vmatprep.subr.bf16.mxu0 0
  %211 = vmatpush1.bf16.msra.mxu0 0
  %212 = vmatprep.subr.bf16.mxu0 0
  %213 = vmatpush1.bf16.msra.mxu0 0
  %214 = vmatprep.subr.bf16.mxu0 0
  %215 = vmatpush1.bf16.msra.mxu0 0
  %216 = vmatprep.subr.bf16.mxu0 0
  %217 = vmatpush1.bf16.msra.mxu0 0
  %218 = vmatprep.subr.bf16.mxu0 0
  %219 = vmatpush1.bf16.msra.mxu0 0
  %220 = vmatprep.subr.bf16.mxu0 0
  %221 = vmatpush1.bf16.msra.mxu0 0
  %222 = vmatprep.subr.bf16.mxu0 0
  %223 = vmatpush1.bf16.msra.mxu0 0
  %224 = vmatprep.subr.bf16.mxu0 0
  %225 = vmatpush1.bf16.msra.mxu0 0
  %226 = vmatprep.mubr.bf16.mxu0 0
  %227 = vmatmul.mubr.bf16.gmra.mrb[0].mxu0 %v130
  %v228 = vpop.f32.mrb[0].mxu0
  %v229 = vadd.f32 0.0, %v228
  %v230 = vpop.f32.mrb[0].mxu0
  %v231 = vpop.f32.mrb[0].mxu0
  %v232 = vadd.f32 0.0, %v231
  %v233 = vpop.f32.mrb[0].mxu0
  %234 = vmatprep.mubr.bf16.mxu0 0
  %235 = vmatmul.mubr.bf16.gmra.mrb[0].mxu0 %v131
  %v236 = vpop.f32.mrb[0].mxu0
  %v237 = vadd.f32 0.0, %v236
  %v238 = vpop.f32.mrb[0].mxu0
  %v239 = vpop.f32.mrb[0].mxu0
  %v240 = vadd.f32 0.0, %v239
  %v241 = vpop.f32.mrb[0].mxu0
  %242 = vmatprep.mubr.bf16.mxu0 0
  %243 = vmatmul.mubr.bf16.gmra.mrb[0].mxu0 %v132
  %v244 = vpop.f32.mrb[0].mxu0
  %v245 = vadd.f32 0.0, %v244
  %v246 = vpop.f32.mrb[0].mxu0
  %v247 = vpop.f32.mrb[0].mxu0
  %v248 = vadd.f32 0.0, %v247
  %v249 = vpop.f32.mrb[0].mxu0
  %250 = vmatprep.mubr.bf16.mxu0 0
  %251 = vmatmul.mubr.bf16.gmra.mrb[0].mxu0 %v133
  %v252 = vpop.f32.mrb[0].mxu0
  %v253 = vadd.f32 0.0, %v252
  %v254 = vpop.f32.mrb[0].mxu0
  %v255 = vpop.f32.mrb[0].mxu0
  %v256 = vadd.f32 0.0, %v255
  %v257 = vpop.f32.mrb[0].mxu0
  %258 = vmatprep.mubr.bf16.mxu0 0
  %259 = vmatmul.mubr.bf16.gmra.mrb[0].mxu0 %v134
  %v260 = vpop.f32.mrb[0].mxu0
  %v261 = vadd.f32 0.0, %v260
  %v262 = vpop.f32.mrb[0].mxu0
  %v263 = vpop.f32.mrb[0].mxu0
  %v264 = vadd.f32 0.0, %v263
  %v265 = vpop.f32.mrb[0].mxu0
  %266 = vmatprep.mubr.bf16.mxu0 0
  %267 = vmatmul.mubr.bf16.gmra.mrb[0].mxu0 %v135
  %v268 = vpop.f32.mrb[0].mxu0
  %v269 = vadd.f32 0.0, %v268
  %v270 = vpop.f32.mrb[0].mxu0
  %v271 = vpop.f32.mrb[0].mxu0
  %v272 = vadd.f32 0.0, %v271
  %v273 = vpop.f32.mrb[0].mxu0
  %274 = vmatprep.mubr.bf16.mxu0 0
  %275 = vmatmul.mubr.bf16.gmra.mrb[0].mxu0 %v136
  %v276 = vpop.f32.mrb[0].mxu0
  %v277 = vadd.f32 0.0, %v276
  %v278 = vpop.f32.mrb[0].mxu0
  %v279 = vpop.f32.mrb[0].mxu0
  %v280 = vadd.f32 0.0, %v279
  %v281 = vpop.f32.mrb[0].mxu0
  %282 = vmatprep.mubr.bf16.mxu0 0
  %283 = vmatmul.mubr.bf16.gmra.mrb[0].mxu0 %v137
  %v284 = vpop.f32.mrb[0].mxu0
  %v285 = vadd.f32 0.0, %v284
  %v286 = vpop.f32.mrb[0].mxu0
  %v287 = vpop.f32.mrb[0].mxu0
  %v288 = vadd.f32 0.0, %v287
  %v289 = vpop.f32.mrb[0].mxu0
  %290 = vdwg.mxu0
  %v291 = vadd.f32 %v50, %v229
  %v292 = vadd.f32 %v51, %v232
  %v293 = vadd.f32 %v52, %v237
  %v294 = vadd.f32 %v53, %v240
  %v295 = vadd.f32 %v54, %v245
  %v296 = vadd.f32 %v55, %v248
  %v297 = vadd.f32 %v56, %v253
  %v298 = vadd.f32 %v57, %v256
  %v299 = vadd.f32 %v58, %v261
  %v300 = vadd.f32 %v59, %v264
  %v301 = vadd.f32 %v60, %v269
  %v302 = vadd.f32 %v61, %v272
  %v303 = vadd.f32 %v62, %v277
  %v304 = vadd.f32 %v63, %v280
  %v305 = vadd.f32 %v64, %v285
  %v306 = vadd.f32 %v65, %v288
  %307 = vst [vmem:[#allocation2] sm:$0xff] %v291
  %308 = vst [vmem:[#allocation2 + $0x8] sm:$0xff] %v292
  %309 = vst [vmem:[#allocation2 + $0x10] sm:$0xff] %v293
  %310 = vst [vmem:[#allocation2 + $0x18] sm:$0xff] %v294
  %311 = vst [vmem:[#allocation2 + $0x20] sm:$0xff] %v295
  %312 = vst [vmem:[#allocation2 + $0x28] sm:$0xff] %v296
  %313 = vst [vmem:[#allocation2 + $0x30] sm:$0xff] %v297
  %314 = vst [vmem:[#allocation2 + $0x38] sm:$0xff] %v298
  %315 = vst [vmem:[#allocation2 + $0x40] sm:$0xff] %v299
  %316 = vst [vmem:[#allocation2 + $0x48] sm:$0xff] %v300
  %317 = vst [vmem:[#allocation2 + $0x50] sm:$0xff] %v301
  %318 = vst [vmem:[#allocation2 + $0x58] sm:$0xff] %v302
  %319 = vst [vmem:[#allocation2 + $0x60] sm:$0xff] %v303
  %320 = vst [vmem:[#allocation2 + $0x68] sm:$0xff] %v304
  %321 = vst [vmem:[#allocation2 + $0x70] sm:$0xff] %v305
  %322 = vst [vmem:[#allocation2 + $0x78] sm:$0xff] %v306
  // Predicated region
  $region38: #{basic_block_forward.3} parent=0 // pred_check
    %p323 = pneg %p30
  $region39: #{basic_block_forward.3} parent=0 // pred_check_branch
    %325 = sbr.rel (%p323) target = $region41
  $region40: #{basic_block_forward.3} parent=0 // pred_region
    %v326 = vld [vmem:[%s4] sm:$0xf]
    %v327 = vld [vmem:[%s4 + $0x4] sm:$0xf]
    %v328 = vld [vmem:[%s4 + $0x8] sm:$0xf]
    %v329 = vld [vmem:[%s4 + $0xc] sm:$0xf]
    %v330 = vld [vmem:[%s4 + $0x10] sm:$0xf]
    %v331 = vld [vmem:[%s4 + $0x14] sm:$0xf]
    %v332 = vld [vmem:[%s4 + $0x18] sm:$0xf]
    %v333 = vld [vmem:[%s4 + $0x1c] sm:$0xf]
    %v334 = vld [vmem:[%s4 + $0x20] sm:$0xf]
    %v335 = vld [vmem:[%s4 + $0x24] sm:$0xf]
    %v336 = vld [vmem:[%s4 + $0x28] sm:$0xf]
    %v337 = vld [vmem:[%s4 + $0x2c] sm:$0xf]
    %v338 = vld [vmem:[%s4 + $0x30] sm:$0xf]
    %v339 = vld [vmem:[%s4 + $0x34] sm:$0xf]
    %v340 = vld [vmem:[%s4 + $0x38] sm:$0xf]
    %v341 = vld [vmem:[%s4 + $0x3c] sm:$0xf]
    %v342 = vld [vmem:[%s5] sm:$0xf]
    %v343 = vld [vmem:[%s5 + $0x4] sm:$0xf]
    %v344 = vld [vmem:[%s5 + $0x8] sm:$0xf]
    %v345 = vld [vmem:[%s5 + $0xc] sm:$0xf]
    %v346 = vld [vmem:[%s5 + $0x10] sm:$0xf]
    %v347 = vld [vmem:[%s5 + $0x14] sm:$0xf]
    %v348 = vld [vmem:[%s5 + $0x18] sm:$0xf]
    %v349 = vld [vmem:[%s5 + $0x1c] sm:$0xf]
    %v350 = vld [vmem:[%s5 + $0x20] sm:$0xf]
    %v351 = vld [vmem:[%s5 + $0x24] sm:$0xf]
    %v352 = vld [vmem:[%s5 + $0x28] sm:$0xf]
    %v353 = vld [vmem:[%s5 + $0x2c] sm:$0xf]
    %v354 = vld [vmem:[%s5 + $0x30] sm:$0xf]
    %v355 = vld [vmem:[%s5 + $0x34] sm:$0xf]
    %v356 = vld [vmem:[%s5 + $0x38] sm:$0xf]
    %v357 = vld [vmem:[%s5 + $0x3c] sm:$0xf]
    %v374 = vunpack.c.l.b16 %v326
    %v375 = vunpack.c.l.b16 %v327
    %v376 = vunpack.c.l.b16 %v328
    %v377 = vunpack.c.l.b16 %v329
    %v378 = vunpack.c.l.b16 %v330
    %v379 = vunpack.c.l.b16 %v331
    %v380 = vunpack.c.l.b16 %v332
    %v381 = vunpack.c.l.b16 %v333
    %v382 = vunpack.c.l.b16 %v334
    %v383 = vunpack.c.l.b16 %v335
    %v384 = vunpack.c.l.b16 %v336
    %v385 = vunpack.c.l.b16 %v337
    %v386 = vunpack.c.l.b16 %v338
    %v387 = vunpack.c.l.b16 %v339
    %v388 = vunpack.c.l.b16 %v340
    %v389 = vunpack.c.l.b16 %v341
    %v390 = vpack.c.b16 %v375, %v374
    %v391 = vpack.c.b16 %v377, %v376
    %v392 = vpack.c.b16 %v379, %v378
    %v393 = vpack.c.b16 %v381, %v380
    %v394 = vpack.c.b16 %v383, %v382
    %v395 = vpack.c.b16 %v385, %v384
    %v396 = vpack.c.b16 %v387, %v386
    %v397 = vpack.c.b16 %v389, %v388
    %v422 = vunpack.c.l.b16 %v342
    %v423 = vunpack.c.l.b16 %v343
    %v424 = vunpack.c.l.b16 %v344
    %v425 = vunpack.c.l.b16 %v345
    %v426 = vunpack.c.l.b16 %v346
    %v427 = vunpack.c.l.b16 %v347
    %v428 = vunpack.c.l.b16 %v348
    %v429 = vunpack.c.l.b16 %v349
    %v430 = vunpack.c.l.b16 %v350
    %v431 = vunpack.c.l.b16 %v351
    %v432 = vunpack.c.l.b16 %v352
    %v433 = vunpack.c.l.b16 %v353
    %v434 = vunpack.c.l.b16 %v354
    %v435 = vunpack.c.l.b16 %v355
    %v436 = vunpack.c.l.b16 %v356
    %v437 = vunpack.c.l.b16 %v357
    %v438 = vpack.c.b16 %v423, %v422
    %v439 = vpack.c.b16 %v425, %v424
    %v440 = vpack.c.b16 %v427, %v426
    %v441 = vpack.c.b16 %v429, %v428
    %v442 = vpack.c.b16 %v431, %v430
    %v443 = vpack.c.b16 %v433, %v432
    %v444 = vpack.c.b16 %v435, %v434
    %v445 = vpack.c.b16 %v437, %v436
    %454 = vmatprep.subr.bf16.mxu0 0
    %455 = vmatpush1.bf16.msra.mxu0 %v438
    %456 = vmatprep.subr.bf16.mxu0 0
    %457 = vmatpush1.bf16.msra.mxu0 %v439
    %458 = vmatprep.subr.bf16.mxu0 0
    %459 = vmatpush1.bf16.msra.mxu0 %v440
    %460 = vmatprep.subr.bf16.mxu0 0
    %461 = vmatpush1.bf16.msra.mxu0 %v441
    %462 = vmatprep.subr.bf16.mxu0 0
    %463 = vmatpush1.bf16.msra.mxu0 %v442
    %464 = vmatprep.subr.bf16.mxu0 0
    %465 = vmatpush1.bf16.msra.mxu0 %v443
    %466 = vmatprep.subr.bf16.mxu0 0
    %467 = vmatpush1.bf16.msra.mxu0 %v444
    %468 = vmatprep.subr.bf16.mxu0 0
    %469 = vmatpush1.bf16.msra.mxu0 %v445
    %470 = vmatprep.subr.bf16.mxu0 0
    %471 = vmatpush1.bf16.msra.mxu0 0
    %472 = vmatprep.subr.bf16.mxu0 0
    %473 = vmatpush1.bf16.msra.mxu0 0
    %474 = vmatprep.subr.bf16.mxu0 0
    %475 = vmatpush1.bf16.msra.mxu0 0
    %476 = vmatprep.subr.bf16.mxu0 0
    %477 = vmatpush1.bf16.msra.mxu0 0
    %478 = vmatprep.subr.bf16.mxu0 0
    %479 = vmatpush1.bf16.msra.mxu0 0
    %480 = vmatprep.subr.bf16.mxu0 0
    %481 = vmatpush1.bf16.msra.mxu0 0
    %482 = vmatprep.subr.bf16.mxu0 0
    %483 = vmatpush1.bf16.msra.mxu0 0
    %484 = vmatprep.subr.bf16.mxu0 0
    %485 = vmatpush1.bf16.msra.mxu0 0
    %486 = vmatprep.mubr.bf16.mxu0 0
    %487 = vmatmul.mubr.bf16.gmra.mrb[0].mxu0 %v390
    %v488 = vpop.f32.mrb[0].mxu0
    %v489 = vadd.f32 0.0, %v488
    %v490 = vpop.f32.mrb[0].mxu0
    %v491 = vpop.f32.mrb[0].mxu0
    %v492 = vadd.f32 0.0, %v491
    %v493 = vpop.f32.mrb[0].mxu0
    %494 = vmatprep.mubr.bf16.mxu0 0
    %495 = vmatmul.mubr.bf16.gmra.mrb[0].mxu0 %v391
    %v496 = vpop.f32.mrb[0].mxu0
    %v497 = vadd.f32 0.0, %v496
    %v498 = vpop.f32.mrb[0].mxu0
    %v499 = vpop.f32.mrb[0].mxu0
    %v500 = vadd.f32 0.0, %v499
    %v501 = vpop.f32.mrb[0].mxu0
    %502 = vmatprep.mubr.bf16.mxu0 0
    %503 = vmatmul.mubr.bf16.gmra.mrb[0].mxu0 %v392
    %v504 = vpop.f32.mrb[0].mxu0
    %v505 = vadd.f32 0.0, %v504
    %v506 = vpop.f32.mrb[0].mxu0
    %v507 = vpop.f32.mrb[0].mxu0
    %v508 = vadd.f32 0.0, %v507
    %v509 = vpop.f32.mrb[0].mxu0
    %510 = vmatprep.mubr.bf16.mxu0 0
    %511 = vmatmul.mubr.bf16.gmra.mrb[0].mxu0 %v393
    %v512 = vpop.f32.mrb[0].mxu0
    %v513 = vadd.f32 0.0, %v512
    %v514 = vpop.f32.mrb[0].mxu0
    %v515 = vpop.f32.mrb[0].mxu0
    %v516 = vadd.f32 0.0, %v515
    %v517 = vpop.f32.mrb[0].mxu0
    %518 = vmatprep.mubr.bf16.mxu0 0
    %519 = vmatmul.mubr.bf16.gmra.mrb[0].mxu0 %v394
    %v520 = vpop.f32.mrb[0].mxu0
    %v521 = vadd.f32 0.0, %v520
    %v522 = vpop.f32.mrb[0].mxu0
    %v523 = vpop.f32.mrb[0].mxu0
    %v524 = vadd.f32 0.0, %v523
    %v525 = vpop.f32.mrb[0].mxu0
    %526 = vmatprep.mubr.bf16.mxu0 0
    %527 = vmatmul.mubr.bf16.gmra.mrb[0].mxu0 %v395
    %v528 = vpop.f32.mrb[0].mxu0
    %v529 = vadd.f32 0.0, %v528
    %v530 = vpop.f32.mrb[0].mxu0
    %v531 = vpop.f32.mrb[0].mxu0
    %v532 = vadd.f32 0.0, %v531
    %v533 = vpop.f32.mrb[0].mxu0
    %534 = vmatprep.mubr.bf16.mxu0 0
    %535 = vmatmul.mubr.bf16.gmra.mrb[0].mxu0 %v396
    %v536 = vpop.f32.mrb[0].mxu0
    %v537 = vadd.f32 0.0, %v536
    %v538 = vpop.f32.mrb[0].mxu0
    %v539 = vpop.f32.mrb[0].mxu0
    %v540 = vadd.f32 0.0, %v539
    %v541 = vpop.f32.mrb[0].mxu0
    %542 = vmatprep.mubr.bf16.mxu0 0
    %543 = vmatmul.mubr.bf16.gmra.mrb[0].mxu0 %v397
    %v544 = vpop.f32.mrb[0].mxu0
    %v545 = vadd.f32 0.0, %v544
    %v546 = vpop.f32.mrb[0].mxu0
    %v547 = vpop.f32.mrb[0].mxu0
    %v548 = vadd.f32 0.0, %v547
    %v549 = vpop.f32.mrb[0].mxu0
    %550 = vdwg.mxu0
    %v551 = vld [vmem:[%s6] sm:$0x1]
    %v553 = vlaneseq
    %v554 = vshrl.u32 %v553, 7
    %v555 = vsub.s32 0, %v554
    %v556 = vrot.slane %v551, %v555
    %v558 = vmul.f32 %v489, %v556
    %v559 = vmul.f32 %v492, %v556
    %v560 = vmul.f32 %v497, %v556
    %v561 = vmul.f32 %v500, %v556
    %v562 = vmul.f32 %v505, %v556
    %v563 = vmul.f32 %v508, %v556
    %v564 = vmul.f32 %v513, %v556
    %v565 = vmul.f32 %v516, %v556
    %v566 = vmul.f32 %v521, %v556
    %v567 = vmul.f32 %v524, %v556
    %v568 = vmul.f32 %v529, %v556
    %v569 = vmul.f32 %v532, %v556
    %v570 = vmul.f32 %v537, %v556
    %v571 = vmul.f32 %v540, %v556
    %v572 = vmul.f32 %v545, %v556
    %v573 = vmul.f32 %v548, %v556
    %v574 = vld [vmem:[%s7] sm:$0x1]
    %v576 = vlaneseq
    %v577 = vshrl.u32 %v576, 7
    %v578 = vsub.s32 0, %v577
    %v579 = vrot.slane %v574, %v578
    %v581 = vadd.f32 %v558, %v579
    %v582 = vadd.f32 %v559, %v579
    %v583 = vadd.f32 %v560, %v579
    %v584 = vadd.f32 %v561, %v579
    %v585 = vadd.f32 %v562, %v579
    %v586 = vadd.f32 %v563, %v579
    %v587 = vadd.f32 %v564, %v579
    %v588 = vadd.f32 %v565, %v579
    %v589 = vadd.f32 %v566, %v579
    %v590 = vadd.f32 %v567, %v579
    %v591 = vadd.f32 %v568, %v579
    %v592 = vadd.f32 %v569, %v579
    %v593 = vadd.f32 %v570, %v579
    %v594 = vadd.f32 %v571, %v579
    %v595 = vadd.f32 %v572, %v579
    %v596 = vadd.f32 %v573, %v579
    %v597 = vld [vmem:[#allocation2] sm:$0xff]
    %v598 = vld [vmem:[#allocation2 + $0x8] sm:$0xff]
    %v599 = vld [vmem:[#allocation2 + $0x10] sm:$0xff]
    %v600 = vld [vmem:[#allocation2 + $0x18] sm:$0xff]
    %v601 = vld [vmem:[#allocation2 + $0x20] sm:$0xff]
    %v602 = vld [vmem:[#allocation2 + $0x28] sm:$0xff]
    %v603 = vld [vmem:[#allocation2 + $0x30] sm:$0xff]
    %v604 = vld [vmem:[#allocation2 + $0x38] sm:$0xff]
    %v605 = vld [vmem:[#allocation2 + $0x40] sm:$0xff]
    %v606 = vld [vmem:[#allocation2 + $0x48] sm:$0xff]
    %v607 = vld [vmem:[#allocation2 + $0x50] sm:$0xff]
    %v608 = vld [vmem:[#allocation2 + $0x58] sm:$0xff]
    %v609 = vld [vmem:[#allocation2 + $0x60] sm:$0xff]
    %v610 = vld [vmem:[#allocation2 + $0x68] sm:$0xff]
    %v611 = vld [vmem:[#allocation2 + $0x70] sm:$0xff]
    %v612 = vld [vmem:[#allocation2 + $0x78] sm:$0xff]
    %v613 = vld [vmem:[%s2] sm:$0x1]
    %v615 = vlaneseq
    %v616 = vshrl.u32 %v615, 7
    %v617 = vsub.s32 0, %v616
    %v618 = vrot.slane %v613, %v617
    %v620 = vmul.f32 %v597, %v618
    %v621 = vmul.f32 %v598, %v618
    %v622 = vmul.f32 %v599, %v618
    %v623 = vmul.f32 %v600, %v618
    %v624 = vmul.f32 %v601, %v618
    %v625 = vmul.f32 %v602, %v618
    %v626 = vmul.f32 %v603, %v618
    %v627 = vmul.f32 %v604, %v618
    %v628 = vmul.f32 %v605, %v618
    %v629 = vmul.f32 %v606, %v618
    %v630 = vmul.f32 %v607, %v618
    %v631 = vmul.f32 %v608, %v618
    %v632 = vmul.f32 %v609, %v618
    %v633 = vmul.f32 %v610, %v618
    %v634 = vmul.f32 %v611, %v618
    %v635 = vmul.f32 %v612, %v618
    %v636 = vld [vmem:[%s3] sm:$0x1]
    %v638 = vlaneseq
    %v639 = vshrl.u32 %v638, 7
    %v640 = vsub.s32 0, %v639
    %v641 = vrot.slane %v636, %v640
    %v643 = vadd.f32 %v620, %v641
    %v644 = vadd.f32 %v621, %v641
    %v645 = vadd.f32 %v622, %v641
    %v646 = vadd.f32 %v623, %v641
    %v647 = vadd.f32 %v624, %v641
    %v648 = vadd.f32 %v625, %v641
    %v649 = vadd.f32 %v626, %v641
    %v650 = vadd.f32 %v627, %v641
    %v651 = vadd.f32 %v628, %v641
    %v652 = vadd.f32 %v629, %v641
    %v653 = vadd.f32 %v630, %v641
    %v654 = vadd.f32 %v631, %v641
    %v655 = vadd.f32 %v632, %v641
    %v656 = vadd.f32 %v633, %v641
    %v657 = vadd.f32 %v634, %v641
    %v658 = vadd.f32 %v635, %v641
    %v659 = vadd.f32 %v643, %v581
    %v660 = vadd.f32 %v644, %v582
    %v661 = vadd.f32 %v645, %v583
    %v662 = vadd.f32 %v646, %v584
    %v663 = vadd.f32 %v647, %v585
    %v664 = vadd.f32 %v648, %v586
    %v665 = vadd.f32 %v649, %v587
    %v666 = vadd.f32 %v650, %v588
    %v667 = vadd.f32 %v651, %v589
    %v668 = vadd.f32 %v652, %v590
    %v669 = vadd.f32 %v653, %v591
    %v670 = vadd.f32 %v654, %v592
    %v671 = vadd.f32 %v655, %v593
    %v672 = vadd.f32 %v656, %v594
    %v673 = vadd.f32 %v657, %v595
    %v674 = vadd.f32 %v658, %v596
    %v675 = vmax.f32 %v659, 0.0
    %v676 = vmax.f32 %v660, 0.0
    %v677 = vmax.f32 %v661, 0.0
    %v678 = vmax.f32 %v662, 0.0
    %v679 = vmax.f32 %v663, 0.0
    %v680 = vmax.f32 %v664, 0.0
    %v681 = vmax.f32 %v665, 0.0
    %v682 = vmax.f32 %v666, 0.0
    %v683 = vmax.f32 %v667, 0.0
    %v684 = vmax.f32 %v668, 0.0
    %v685 = vmax.f32 %v669, 0.0
    %v686 = vmax.f32 %v670, 0.0
    %v687 = vmax.f32 %v671, 0.0
    %v688 = vmax.f32 %v672, 0.0
    %v689 = vmax.f32 %v673, 0.0
    %v690 = vmax.f32 %v674, 0.0
    %691 = vst [vmem:[%s8] sm:$0xff] %v675
    %692 = vst [vmem:[%s8 + $0x8] sm:$0xff] %v676
    %693 = vst [vmem:[%s8 + $0x10] sm:$0xff] %v677
    %694 = vst [vmem:[%s8 + $0x18] sm:$0xff] %v678
    %695 = vst [vmem:[%s8 + $0x20] sm:$0xff] %v679
    %696 = vst [vmem:[%s8 + $0x28] sm:$0xff] %v680
    %697 = vst [vmem:[%s8 + $0x30] sm:$0xff] %v681
    %698 = vst [vmem:[%s8 + $0x38] sm:$0xff] %v682
    %699 = vst [vmem:[%s8 + $0x40] sm:$0xff] %v683
    %700 = vst [vmem:[%s8 + $0x48] sm:$0xff] %v684
    %701 = vst [vmem:[%s8 + $0x50] sm:$0xff] %v685
    %702 = vst [vmem:[%s8 + $0x58] sm:$0xff] %v686
    %703 = vst [vmem:[%s8 + $0x60] sm:$0xff] %v687
    %704 = vst [vmem:[%s8 + $0x68] sm:$0xff] %v688
    %705 = vst [vmem:[%s8 + $0x70] sm:$0xff] %v689
    %706 = vst [vmem:[%s8 + $0x78] sm:$0xff] %v690
  $region41: #{basic_block_forward.3} parent=0 // pred_fallthru
    _
  // Predicated region
  $region42: #{basic_block_forward.3} parent=0 // pred_check
    _
  $region43: #{basic_block_forward.3} parent=0 // pred_check_branch
    %708 = sbr.rel (0) target = $region45
  $region44: #{basic_block_forward.3} parent=0 // pred_region
    _
  $region45: #{basic_block_forward.3} parent=0 // pred_fallthru
    _
  // Predicated region
  $region46: #{basic_block_forward.3} parent=0 // pred_check
    _
  $region47: #{basic_block_forward.3} parent=0 // pred_check_branch
    %710 = sbr.rel (0) target = $region49
  $region48: #{basic_block_forward.3} parent=0 // pred_region
    _
  $region49: #{basic_block_forward.3} parent=0 // pred_fallthru
    _

</llo_original>
